<compile_context>
chip_gen: v5e
topology: v5e:2x2
jax: 0.10.0
libtpu: 0.0.40
codegen_flags: <defaults>
</compile_context>

<pallas_src>
import functools

import jax
import jax.numpy as jnp
from jax.experimental import pallas as pl
from jax.experimental.pallas import tpu as pltpu


def _lcr_kernel(logits_ref, labels_ref, wt_ref, w2t_ref, out_ref, *, n_rows):
    i = pl.program_id(0)

    x = logits_ref[...]            # [TN, C]
    y = labels_ref[...]            # [TN, C]
    tn, c = x.shape

    # Valid-row mask for the (possibly ragged) last batch tile.
    row = i * tn + jax.lax.broadcasted_iota(jnp.int32, (tn, 1), 0)
    valid = row < n_rows                                              # [TN, 1] bool

    # No-op for f32 inputs; keeps BCE / LCR math in f32 if bf16 is ever fed in.
    xf = x.astype(jnp.float32)
    yf = y.astype(jnp.float32)

    # ---- BCE with logits (numerically stable PyTorch formula), partial SUM ----
    bce_elem = jnp.maximum(xf, 0.0) - xf * yf + jnp.log1p(jnp.exp(-jnp.abs(xf)))
    # jnp.where (not *mask) so NaN/Inf in padded rows cannot leak into the sum.
    bce_part = jnp.sum(jnp.where(valid, bce_elem, 0.0), keepdims=True)   # (1, 1)

    # ---- preds = round(sigmoid(x)) : 1 iff x > 0 ; forced to 0 on padded rows ----
    p = jnp.where(valid & (xf > 0.0), 1.0, 0.0)                          # [TN, C], 0/1

    # ---- LCR via expanded square; weights are pre-transposed & resident ----
    pw = jnp.dot(p, wt_ref[...], preferred_element_type=jnp.float32)     # sum_c p_c W[r,c]
    pw2 = jnp.dot(p, w2t_ref[...], preferred_element_type=jnp.float32)   # sum_c p_c W[r,c]^2
    s = jnp.sum(p, axis=1, keepdims=True)                                # [TN, 1]

    sq = pw2 - 2.0 * p * pw + p * s                                      # p^2 == p
    term = jnp.sqrt(jnp.maximum(sq, 0.0))                                # [TN, C]
    lcr_rows = jnp.sum(term, axis=1, keepdims=True) * (1.0 / c)          # mean over classes
    lcr_part = jnp.sum(jnp.where(valid, lcr_rows, 0.0), keepdims=True)   # (1, 1)

    # ---- lane-dense (8,128) partial-sum block: [0,0]=bce sum, [0,1]=lcr sum ----
    sub = jax.lax.broadcasted_iota(jnp.int32, (8, 128), 0)
    lane = jax.lax.broadcasted_iota(jnp.int32, (8, 128), 1)
    sel_bce = ((sub == 0) & (lane == 0)).astype(jnp.float32)
    sel_lcr = ((sub == 0) & (lane == 1)).astype(jnp.float32)
    out_ref[0] = bce_part * sel_bce + lcr_part * sel_lcr


def lcr_loss(logits, labels, word_embedding, lam, *, block_n=1024):
    """Pallas implementation of LCR.forward(logits, labels, index)."""
    n, c = logits.shape
    assert word_embedding.shape == (c, c)

    # One-time (wrapper-side) weight prep: contraction-ready transposes.
    w = word_embedding.astype(jnp.float32)
    wt = w.T                      # [C, C]
    w2t = (w * w).T               # [C, C]

    # Pick the batch tile: full batch if small, otherwise the largest multiple
    # of 8 (<= block_n) whose double-buffered tiles + resident weights fit a
    # budget that is safe on v7x (64 MiB physical VMEM) and well above v5e's
    # 16 MiB scoped default.
    vmem_budget = 48 * 1024 * 1024

    def vmem_estimate(tn):
        return 4 * (2 * 2 * tn * c      # logits + labels, double-buffered
                    + 2 * 2 * c * c     # two resident pre-transposed weights
                    + 2 * 8 * 128)      # partial-sum output block

    if n <= block_n:
        tn = n
    else:
        tn = max(8, (block_n // 8) * 8)
    while tn > 8 and vmem_estimate(tn) > vmem_budget:
        tn = max(8, ((tn // 2) // 8) * 8)

    grid = pl.cdiv(n, tn)
    kernel = functools.partial(_lcr_kernel, n_rows=n)

    parts = pl.pallas_call(
        kernel,
        out_shape=jax.ShapeDtypeStruct((grid, 8, 128), jnp.float32),
        grid=(grid,),
        in_specs=[
            pl.BlockSpec((tn, c), lambda i: (i, 0)),      # logits tile
            pl.BlockSpec((tn, c), lambda i: (i, 0)),      # labels tile
            pl.BlockSpec((c, c), lambda i: (0, 0)),       # resident W.T
            pl.BlockSpec((c, c), lambda i: (0, 0)),       # resident (W*W).T
        ],
        out_specs=pl.BlockSpec((1, 8, 128), lambda i: (i, 0, 0)),
        compiler_params=pltpu.CompilerParams(
            dimension_semantics=("parallel",),
            vmem_limit_bytes=int(min(max(2 * vmem_estimate(tn),
                                         16 * 1024 * 1024), vmem_budget)),
        ),
    )(logits, labels, wt, w2t)

    # Trivial final reduction / scaling (few scalars) stays in XLA.
    bce_sum = jnp.sum(parts[:, 0, 0])
    lcr_sum = jnp.sum(parts[:, 0, 1])
    return bce_sum / (n * c) + lam * lcr_sum / n


def lcr_loss_ref(logits, labels, word_embedding, lam):
    """Pure-JAX reference mirroring the PyTorch per-image loop."""
    x = logits.astype(jnp.float32)
    y = labels.astype(jnp.float32)
    w = word_embedding.astype(jnp.float32)
    bce = jnp.mean(jnp.maximum(x, 0.0) - x * y + jnp.log1p(jnp.exp(-jnp.abs(x))))
    p = jnp.where(x > 0.0, 1.0, 0.0)
    n, c = p.shape
    # matrix1[i] = tile(p[i]) * W ; matrix2[i] = outer(p[i], p[i])
    m1 = p[:, None, :] * w[None, :, :]                     # [N, C, C]
    m2 = p[:, :, None] * p[:, None, :]                     # [N, C, C]
    row = jnp.sqrt(jnp.sum(jnp.square(m1 - m2), axis=2))   # [N, C]
    lcr = jnp.sum(jnp.mean(row, axis=1))
    return bce + lam * lcr / n


if __name__ == "__main__":
    key = jax.random.PRNGKey(0)
    k1, k2, k3 = jax.random.split(key, 3)

    N, C = 8, 16  # batch of 8 images, 16 classes
    lam = 0.1

    logits = jax.random.normal(k1, (N, C), dtype=jnp.float32) * 2.0
    labels = (jax.random.uniform(k2, (N, C)) > 0.5).astype(jnp.float32)
    # Deterministic synthetic "GloVe" class-embedding matrix [C, C].
    # TODO(synk): real module loads wordembedding/<dataset>_glove.npy from disk.
    word_embedding = jax.random.normal(k3, (C, C), dtype=jnp.float32) * 0.5

    loss = lcr_loss(logits, labels, word_embedding, lam)
    jax.block_until_ready(loss)

    ref = lcr_loss_ref(logits, labels, word_embedding, lam)
    assert jnp.allclose(loss, ref, rtol=1e-5, atol=1e-5), (loss, ref)

    print("KERNEL_OK")
</pallas_src>

<mosaic_0001>
module attributes {stable_mosaic.version = 11 : i64} {
  func.func @_lcr_kernel(%arg0: i32, %arg1: memref<8x16xf32, #tpu.memory_space<vmem>>, %arg2: memref<8x16xf32, #tpu.memory_space<vmem>>, %arg3: memref<16x16xf32, #tpu.memory_space<vmem>>, %arg4: memref<16x16xf32, #tpu.memory_space<vmem>>, %arg5: memref<1x8x128xf32, #tpu.memory_space<vmem>>) attributes {dimension_semantics = [#tpu.dimension_semantics<parallel>], iteration_bounds = array<i64: 1>, scalar_prefetch = 0 : i64, scratch_operands = 0 : i64, tpu.core_type = #tpu.core_type<tc>, window_params = [{transform_indices = @transform_0, window_bounds = array<i64: 8, 16>}, {transform_indices = @transform_1, window_bounds = array<i64: 8, 16>}, {pipeline_mode = #tpu.pipeline_mode<synchronous>, transform_indices = @transform_2, window_bounds = array<i64: 16, 16>}, {pipeline_mode = #tpu.pipeline_mode<synchronous>, transform_indices = @transform_3, window_bounds = array<i64: 16, 16>}, {transform_indices = @transform_4, window_bounds = array<i64: 1, 8, 128>}]} {
    %c0 = arith.constant 0 : index
    %c0_0 = arith.constant 0 : index
    %0 = vector.load %arg1[%c0, %c0_0] : memref<8x16xf32, #tpu.memory_space<vmem>>, vector<8x16xf32>
    %c0_1 = arith.constant 0 : index
    %c0_2 = arith.constant 0 : index
    %1 = vector.load %arg2[%c0_1, %c0_2] : memref<8x16xf32, #tpu.memory_space<vmem>>, vector<8x16xf32>
    %c8_i32 = arith.constant 8 : i32
    %2 = arith.muli %arg0, %c8_i32 : i32
    %3 = tpu.iota {dimensions = array<i32: 0>} : vector<8x1xi32>
    %4 = vector.broadcast %2 : i32 to vector<8x1xi32>
    %5 = arith.addi %4, %3 : vector<8x1xi32>
    %c8_i32_3 = arith.constant 8 : i32
    %6 = vector.broadcast %c8_i32_3 : i32 to vector<8x1xi32>
    %7 = arith.cmpi slt, %5, %6 : vector<8x1xi32>
    %cst = arith.constant 0.000000e+00 : f32
    %8 = vector.broadcast %cst : f32 to vector<8x16xf32>
    %9 = arith.maximumf %0, %8 : vector<8x16xf32>
    %10 = arith.mulf %0, %1 : vector<8x16xf32>
    %11 = arith.subf %9, %10 : vector<8x16xf32>
    %12 = math.absf %0 : vector<8x16xf32>
    %cst_4 = arith.constant 0.000000e+00 : f32
    %13 = vector.broadcast %cst_4 : f32 to vector<8x16xf32>
    %14 = arith.subf %13, %12 : vector<8x16xf32>
    %15 = math.exp %14 : vector<8x16xf32>
    %16 = math.log1p %15 : vector<8x16xf32>
    %17 = arith.addf %11, %16 : vector<8x16xf32>
    %cst_5 = arith.constant 0.000000e+00 : f32
    %18 = vector.shape_cast %7 : vector<8x1xi1> to vector<8x1xi1>
    %19 = vector.broadcast %18 : vector<8x1xi1> to vector<8x16xi1>
    %20 = vector.broadcast %cst_5 : f32 to vector<8x16xf32>
    %21 = arith.select %19, %17, %20 : vector<8x16xi1>, vector<8x16xf32>
    %22 = vector.shape_cast %21 : vector<8x16xf32> to vector<1x8x16xf32>
    %cst_6 = arith.constant dense<0.000000e+00> : vector<1xf32>
    %23 = vector.multi_reduction <add>, %22, %cst_6 [1, 2] : vector<1x8x16xf32> to vector<1xf32>
    %24 = vector.shape_cast %23 : vector<1xf32> to vector<1x1x1xf32>
    %25 = vector.extract %24[0, 0, 0] : f32 from vector<1x1x1xf32>
    %26 = vector.broadcast %25 : f32 to vector<1x1xf32>
    %cst_7 = arith.constant 0.000000e+00 : f32
    %27 = vector.broadcast %cst_7 : f32 to vector<8x16xf32>
    %28 = arith.cmpf ogt, %0, %27 : vector<8x16xf32>
    %29 = vector.broadcast %7 : vector<8x1xi1> to vector<8x16xi1>
    %30 = arith.andi %29, %28 : vector<8x16xi1>
    %cst_8 = arith.constant 1.000000e+00 : f32
    %cst_9 = arith.constant 0.000000e+00 : f32
    %31 = vector.broadcast %cst_8 : f32 to vector<8x16xf32>
    %32 = vector.broadcast %cst_9 : f32 to vector<8x16xf32>
    %33 = arith.select %30, %31, %32 : vector<8x16xi1>, vector<8x16xf32>
    %c0_10 = arith.constant 0 : index
    %c0_11 = arith.constant 0 : index
    %34 = vector.load %arg3[%c0_10, %c0_11] : memref<16x16xf32, #tpu.memory_space<vmem>>, vector<16x16xf32>
    %cst_12 = arith.constant dense<0.000000e+00> : vector<8x16xf32>
    %35 = tpu.matmul %33, %34, %cst_12 {dimension_numbers = #tpu.dot_dimension_numbers<[1], [0], [0], [1], [0, 0, 1, 1], [], []>} : vector<8x16xf32>, vector<16x16xf32>, vector<8x16xf32> -> vector<8x16xf32>
    %c0_13 = arith.constant 0 : index
    %c0_14 = arith.constant 0 : index
    %36 = vector.load %arg4[%c0_13, %c0_14] : memref<16x16xf32, #tpu.memory_space<vmem>>, vector<16x16xf32>
    %cst_15 = arith.constant dense<0.000000e+00> : vector<8x16xf32>
    %37 = tpu.matmul %33, %36, %cst_15 {dimension_numbers = #tpu.dot_dimension_numbers<[1], [0], [0], [1], [0, 0, 1, 1], [], []>} : vector<8x16xf32>, vector<16x16xf32>, vector<8x16xf32> -> vector<8x16xf32>
    %cst_16 = arith.constant dense<0.000000e+00> : vector<8xf32>
    %38 = vector.multi_reduction <add>, %33, %cst_16 [1] : vector<8x16xf32> to vector<8xf32>
    %39 = vector.shape_cast %38 : vector<8xf32> to vector<8x1xf32>
    %cst_17 = arith.constant 2.000000e+00 : f32
    %40 = vector.broadcast %cst_17 : f32 to vector<8x16xf32>
    %41 = arith.mulf %40, %33 : vector<8x16xf32>
    %42 = arith.mulf %41, %35 : vector<8x16xf32>
    %43 = arith.subf %37, %42 : vector<8x16xf32>
    %44 = vector.broadcast %39 : vector<8x1xf32> to vector<8x16xf32>
    %45 = arith.mulf %33, %44 : vector<8x16xf32>
    %46 = arith.addf %43, %45 : vector<8x16xf32>
    %cst_18 = arith.constant 0.000000e+00 : f32
    %47 = vector.broadcast %cst_18 : f32 to vector<8x16xf32>
    %48 = arith.maximumf %46, %47 : vector<8x16xf32>
    %49 = math.sqrt %48 : vector<8x16xf32>
    %cst_19 = arith.constant dense<0.000000e+00> : vector<8xf32>
    %50 = vector.multi_reduction <add>, %49, %cst_19 [1] : vector<8x16xf32> to vector<8xf32>
    %51 = vector.shape_cast %50 : vector<8xf32> to vector<8x1xf32>
    %cst_20 = arith.constant 6.250000e-02 : f32
    %52 = vector.broadcast %cst_20 : f32 to vector<8x1xf32>
    %53 = arith.mulf %51, %52 : vector<8x1xf32>
    %cst_21 = arith.constant 0.000000e+00 : f32
    %54 = vector.broadcast %cst_21 : f32 to vector<8x1xf32>
    %55 = arith.select %7, %53, %54 : vector<8x1xi1>, vector<8x1xf32>
    %56 = vector.shape_cast %55 : vector<8x1xf32> to vector<1x8x1xf32>
    %cst_22 = arith.constant dense<0.000000e+00> : vector<1xf32>
    %57 = vector.multi_reduction <add>, %56, %cst_22 [1, 2] : vector<1x8x1xf32> to vector<1xf32>
    %58 = vector.shape_cast %57 : vector<1xf32> to vector<1x1x1xf32>
    %59 = vector.extract %58[0, 0, 0] : f32 from vector<1x1x1xf32>
    %60 = vector.broadcast %59 : f32 to vector<1x1xf32>
    %61 = tpu.iota {dimensions = array<i32: 0>} : vector<8x128xi32>
    %62 = tpu.iota {dimensions = array<i32: 1>} : vector<8x128xi32>
    %c0_i32 = arith.constant 0 : i32
    %63 = vector.broadcast %c0_i32 : i32 to vector<8x128xi32>
    %64 = arith.cmpi eq, %61, %63 : vector<8x128xi32>
    %c0_i32_23 = arith.constant 0 : i32
    %65 = vector.broadcast %c0_i32_23 : i32 to vector<8x128xi32>
    %66 = arith.cmpi eq, %62, %65 : vector<8x128xi32>
    %67 = arith.andi %64, %66 : vector<8x128xi1>
    %68 = arith.extui %67 : vector<8x128xi1> to vector<8x128xi32>
    %69 = arith.sitofp %68 : vector<8x128xi32> to vector<8x128xf32>
    %c0_i32_24 = arith.constant 0 : i32
    %70 = vector.broadcast %c0_i32_24 : i32 to vector<8x128xi32>
    %71 = arith.cmpi eq, %61, %70 : vector<8x128xi32>
    %c1_i32 = arith.constant 1 : i32
    %72 = vector.broadcast %c1_i32 : i32 to vector<8x128xi32>
    %73 = arith.cmpi eq, %62, %72 : vector<8x128xi32>
    %74 = arith.andi %71, %73 : vector<8x128xi1>
    %75 = arith.extui %74 : vector<8x128xi1> to vector<8x128xi32>
    %76 = arith.sitofp %75 : vector<8x128xi32> to vector<8x128xf32>
    %77 = vector.broadcast %26 : vector<1x1xf32> to vector<8x128xf32>
    %78 = arith.mulf %77, %69 : vector<8x128xf32>
    %79 = vector.broadcast %60 : vector<1x1xf32> to vector<8x128xf32>
    %80 = arith.mulf %79, %76 : vector<8x128xf32>
    %81 = arith.addf %78, %80 : vector<8x128xf32>
    %c0_25 = arith.constant 0 : index
    %c0_26 = arith.constant 0 : index
    %c0_27 = arith.constant 0 : index
    %82 = vector.load %arg5[%c0_25, %c0_26, %c0_27] : memref<1x8x128xf32, #tpu.memory_space<vmem>>, vector<1x8x128xf32>
    %83 = vector.shape_cast %82 : vector<1x8x128xf32> to vector<8x128xf32>
    %84 = vector.shape_cast %81 : vector<8x128xf32> to vector<1x8x128xf32>
    tpu.vector_store %arg5[%c0_25, %c0_26, %c0_27], %84 {strides = array<i32>} : memref<1x8x128xf32, #tpu.memory_space<vmem>>, vector<1x8x128xf32>,
    return
  }
  func.func @transform_0(%arg0: i32) -> (i32, i32) {
    %c0_i32 = arith.constant 0 : i32
    %c0_i32_0 = arith.constant 0 : i32
    return %arg0, %c0_i32 : i32, i32
  }
  func.func @transform_1(%arg0: i32) -> (i32, i32) {
    %c0_i32 = arith.constant 0 : i32
    %c0_i32_0 = arith.constant 0 : i32
    return %arg0, %c0_i32 : i32, i32
  }
  func.func @transform_2(%arg0: i32) -> (i32, i32) {
    %c0_i32 = arith.constant 0 : i32
    %c0_i32_0 = arith.constant 0 : i32
    %c0_i32_1 = arith.constant 0 : i32
    return %c0_i32, %c0_i32_0 : i32, i32
  }
  func.func @transform_3(%arg0: i32) -> (i32, i32) {
    %c0_i32 = arith.constant 0 : i32
    %c0_i32_0 = arith.constant 0 : i32
    %c0_i32_1 = arith.constant 0 : i32
    return %c0_i32, %c0_i32_0 : i32, i32
  }
  func.func @transform_4(%arg0: i32) -> (i32, i32, i32) {
    %c0_i32 = arith.constant 0 : i32
    %c0_i32_0 = arith.constant 0 : i32
    %c0_i32_1 = arith.constant 0 : i32
    return %arg0, %c0_i32, %c0_i32_0 : i32, i32, i32
  }
}

</mosaic_0001>

<llo_original>
// kernel: tpu_custom_call.1
$region0: #{tpu_custom_call.1}
  #allocation0 [shape = 'u32[]', space=smem, size = 0x4, offset = 0x4, fixed_abs, tag = 'smem constant byte address 0x4 - core index']
  #allocation1 [shape = 'u32[72,128]{1,0:T(1,128)}', space=vmem, size = 0x9000, scoped, tag = 'internal scratch']
  %s0 = inlined_call_operand.hbm [shape: f32[8,16], index: 0, kind: input, shape index: {}]
  %s1 = inlined_call_operand.hbm [shape: f32[8,16], index: 1, kind: input, shape index: {}]
  %s2 = inlined_call_operand.hbm [shape: f32[16,16], index: 2, kind: input, shape index: {}]
  %s3 = inlined_call_operand.hbm [shape: f32[16,16], index: 3, kind: input, shape index: {}]
  %s4 = inlined_call_operand.hbm [shape: f32[1,8,128], index: 4, kind: output, shape index: {}]
  %s5 = sld [smem:[#allocation0]]
  $region42: #{tpu_custom_call.1} parent=0
    _
  %s7 = ssub.s32 1, %s5
  %s8 = scalar_select 0, %s7, %s5
  $region1: #{tpu_custom_call.1} parent=0
    #allocation2 [shape = 'u8[4096]{0}', space=vmem, size = 0x1000, scoped, tag = 'input window, operand 0, single buffered']
    #allocation3 [shape = 's32[1]{0}', space=sflag, size = 0x4, scoped, tag = 'scoped memory for tpu_custom_call.1']
    #allocation4 [shape = 's32[1]{0}', space=sflag, size = 0x4, scoped, tag = 'scoped memory for tpu_custom_call.1']
    #allocation5 [shape = 'u8[4096]{0}', space=vmem, size = 0x1000, scoped, tag = 'input window, operand 1, single buffered']
    #allocation6 [shape = 's32[1]{0}', space=sflag, size = 0x4, scoped, tag = 'scoped memory for tpu_custom_call.1']
    #allocation7 [shape = 'u8[8192]{0}', space=vmem, size = 0x2000, scoped, tag = 'input window, operand 2, single buffered']
    #allocation8 [shape = 'u8[8192]{0}', space=vmem, size = 0x2000, scoped, tag = 'input window, operand 3, single buffered']
    #allocation9 [shape = 's32[1]{0}', space=sflag, size = 0x4, scoped, tag = 'scoped memory for tpu_custom_call.1']
    #allocation10 [shape = 'u8[4096]{0}', space=vmem, size = 0x1000, scoped, tag = 'output window, operand 0, single buffered']
    %9 = vsyncpa [#allocation3], 0
    %10 = vsyncpa [#allocation6], 0
    %11 = vsyncpa [#allocation9], 0
    %12 = vsyncpa [#allocation4], 0
    // Predicated region
    $region2: #{tpu_custom_call.1} parent=1 // pred_check
      _
    $region3: #{tpu_custom_call.1} parent=1 // pred_check_branch
      %14 = sbr.rel (0) target = $region5
    $region4: #{tpu_custom_call.1} parent=1 // pred_region
      %16 = vsyncadd [#allocation3], 0
      %s18 = sshll.u32 %s0, 4
      %s19 = int_to_ptr.hbm [resolvable:$true] %s18
      %s20 = sshll.u32 [#allocation2], 4
      %s21 = int_to_ptr.vmem [resolvable:$true] %s20
      %23 = dma.hbm_to_vmem [thread:$0]  %s19, 128, %s21, [#allocation3]
    $region5: #{tpu_custom_call.1} parent=1 // pred_fallthru
      _
    // Predicated region
    $region6: #{tpu_custom_call.1} parent=1 // pred_check
      _
    $region7: #{tpu_custom_call.1} parent=1 // pred_check_branch
      %25 = sbr.rel (0) target = $region9
    $region8: #{tpu_custom_call.1} parent=1 // pred_region
      %27 = vsyncadd [#allocation6], 0
      %s29 = sshll.u32 %s1, 4
      %s30 = int_to_ptr.hbm [resolvable:$true] %s29
      %s31 = sshll.u32 [#allocation5], 4
      %s32 = int_to_ptr.vmem [resolvable:$true] %s31
      %34 = dma.hbm_to_vmem [thread:$0]  %s30, 128, %s32, [#allocation6]
    $region9: #{tpu_custom_call.1} parent=1 // pred_fallthru
      _
    // Predicated region
    $region10: #{tpu_custom_call.1} parent=1 // pred_check
      _
    $region11: #{tpu_custom_call.1} parent=1 // pred_check_branch
      %36 = sbr.rel (0) target = $region13
    $region12: #{tpu_custom_call.1} parent=1 // pred_region
      %38 = vsyncadd [#allocation6], 0
      %s39 = sshll.u32 %s2, 4
      %s40 = int_to_ptr.hbm [resolvable:$true] %s39
      %s41 = sshll.u32 [#allocation7], 4
      %s42 = int_to_ptr.vmem [resolvable:$true] %s41
      %47 = dma.hbm_to_vmem [thread:$0]  %s40, 256, %s42, [#allocation6], 128, 128, 8
    $region13: #{tpu_custom_call.1} parent=1 // pred_fallthru
      _
    // Predicated region
    $region14: #{tpu_custom_call.1} parent=1 // pred_check
      _
    $region15: #{tpu_custom_call.1} parent=1 // pred_check_branch
      %49 = sbr.rel (0) target = $region17
    $region16: #{tpu_custom_call.1} parent=1 // pred_region
      %51 = vsyncadd [#allocation9], 0
      %s52 = sshll.u32 %s3, 4
      %s53 = int_to_ptr.hbm [resolvable:$true] %s52
      %s54 = sshll.u32 [#allocation8], 4
      %s55 = int_to_ptr.vmem [resolvable:$true] %s54
      %60 = dma.hbm_to_vmem [thread:$0]  %s53, 256, %s55, [#allocation9], 128, 128, 8
    $region17: #{tpu_custom_call.1} parent=1 // pred_fallthru
      _
    // Predicated region
    $region18: #{tpu_custom_call.1} parent=1 // pred_check
      _
    $region19: #{tpu_custom_call.1} parent=1 // pred_check_branch
      %62 = sbr.rel (0) target = $region21
    $region20: #{tpu_custom_call.1} parent=1 // pred_region
      %64 = dma.done [#allocation3], 128
    $region21: #{tpu_custom_call.1} parent=1 // pred_fallthru
      _
    // Predicated region
    $region22: #{tpu_custom_call.1} parent=1 // pred_check
      _
    $region23: #{tpu_custom_call.1} parent=1 // pred_check_branch
      %66 = sbr.rel (0) target = $region25
    $region24: #{tpu_custom_call.1} parent=1 // pred_region
      %68 = dma.done [#allocation6], 128
    $region25: #{tpu_custom_call.1} parent=1 // pred_fallthru
      _
    // Predicated region
    $region26: #{tpu_custom_call.1} parent=1 // pred_check
      _
    $region27: #{tpu_custom_call.1} parent=1 // pred_check_branch
      %70 = sbr.rel (0) target = $region29
    $region28: #{tpu_custom_call.1} parent=1 // pred_region
      %72 = dma.done [#allocation6], 256
    $region29: #{tpu_custom_call.1} parent=1 // pred_fallthru
      _
    // Predicated region
    $region30: #{tpu_custom_call.1} parent=1 // pred_check
      _
    $region31: #{tpu_custom_call.1} parent=1 // pred_check_branch
      %74 = sbr.rel (0) target = $region33
    $region32: #{tpu_custom_call.1} parent=1 // pred_region
      %76 = dma.done [#allocation9], 256
    $region33: #{tpu_custom_call.1} parent=1 // pred_fallthru
      _
    %v77 = vld [vmem:[#allocation2] sm:$0xff]
    %v78 = vld [vmem:[#allocation5] sm:$0xff]
    %s79 = smul.u32 0, 8
    %v80 = vlaneseq
    %v81 = vshrl.u32 %v80, 7
    %v82 = vstv %s79
    %v83 = vadd.s32 %v82, %v81
    %vm84 = vcmp.lt.s32.totalorder %v83, 8
    %v85 = vmax.f32 %v77, 0.0
    %v86 = vmul.f32 %v77, %v78
    %v87 = vsub.f32 %v85, %v86
    %v88 = vand.u32 2147483647, %v77
    %v89 = vsub.f32 0.0, %v88
    %v90 = vmul.f32 %v89, 1.442695
    %v91 = vpow.pop %v90
    %v92 = vadd.f32 %v91, 1.0
    %v93 = vlog2.pop %v92
    %v94 = vmul.f32 %v93, 0.6931472
    %v95 = vmul.f32 -0.5, %v91
    %v96 = vadd.f32 %v95, 1.0
    %v97 = vmul.f32 %v96, %v91
    %v98 = vand.u32 2147483647, %v91
    %vm99 = vcmp.lt.f32.partialorder %v98, 0.0004427343
    %v100 = vsel %vm99, %v97, %v94
    %v101 = vadd.f32 %v87, %v100
    %v102 = vsel %vm84, 1, 0
    %vm103 = vcmp.eq.s32.totalorder %v102, 1
    %v104 = vsel %vm103, %v101, 0.0
    %vm105 = vcmask 130048
    %v106 = vsel %vm105, %v104, 0.0
    %107 = vadd.xlane.f32.xlu0 %v106
    %v108 = vpop.xlane.xlu0 %107
    %v109 = vrot.slane %v108, 4
    %v110 = vadd.f32 %v108, %v109
    %v111 = vrot.slane %v110, 2
    %v112 = vadd.f32 %v110, %v111
    %v113 = vrot.slane %v112, 1
    %v114 = vadd.f32 %v112, %v113
    %s115 = vtos %v114
    %vm116 = vcmp.gt.f32.partialorder %v77, 0.0
    %vm117 = vmand %vm103, %vm116
    %v118 = vsel %vm117, 1.0, 0.0
    %v119 = vld [vmem:[#allocation7] sm:$0xff]
    %v120 = vld [vmem:[#allocation7 + $0x8] sm:$0xff]
    %v122 = vsel %vm105, %v118, 0
    %124 = vmatpush.msra.mxu0 0.0
    %125 = vmatpush.msra.mxu0 0.0
    %126 = vmatpush.msra.mxu0 0.0
    %127 = vmatpush.msra.mxu0 0.0
    %128 = vmatpush.msra.mxu0 0.0
    %129 = vmatpush.msra.mxu0 0.0
    %130 = vmatpush.msra.mxu0 0.0
    %131 = vmatpush.msra.mxu0 0.0
    %132 = vmatpush.msra.mxu0 0.0
    %133 = vmatpush.msra.mxu0 0.0
    %134 = vmatpush.msra.mxu0 0.0
    %135 = vmatpush.msra.mxu0 0.0
    %136 = vmatpush.msra.mxu0 0.0
    %137 = vmatpush.msra.mxu0 0.0
    %138 = vmatpush.msra.mxu0 %v120
    %139 = vmatpush.msra.mxu0 %v119
    %140 = vmatmul.f32.gmra.mxu0 %v122
    %v141 = vpop.f32.mrf.mxu0
    %v142 = vadd.f32 0.0, %v141
    %143 = vdwg.mxu0
    %v144 = vld [vmem:[#allocation8] sm:$0xff]
    %v145 = vld [vmem:[#allocation8 + $0x8] sm:$0xff]
    %146 = vmatpush.msra.mxu0 0.0
    %147 = vmatpush.msra.mxu0 0.0
    %148 = vmatpush.msra.mxu0 0.0
    %149 = vmatpush.msra.mxu0 0.0
    %150 = vmatpush.msra.mxu0 0.0
    %151 = vmatpush.msra.mxu0 0.0
    %152 = vmatpush.msra.mxu0 0.0
    %153 = vmatpush.msra.mxu0 0.0
    %154 = vmatpush.msra.mxu0 0.0
    %155 = vmatpush.msra.mxu0 0.0
    %156 = vmatpush.msra.mxu0 0.0
    %157 = vmatpush.msra.mxu0 0.0
    %158 = vmatpush.msra.mxu0 0.0
    %159 = vmatpush.msra.mxu0 0.0
    %160 = vmatpush.msra.mxu0 %v145
    %161 = vmatpush.msra.mxu0 %v144
    %162 = vmatmul.f32.gmra.mxu0 %v122
    %v163 = vpop.f32.mrf.mxu0
    %v164 = vadd.f32 0.0, %v163
    %165 = vdwg.mxu0
    %v166 = vsel %vm105, %v118, 0.0
    %167 = vadd.xlane.f32.xlu0 %v166
    %v168 = vpop.xlane.xlu0 %167
    %v169 = vmul.f32 %v118, 2.0
    %v170 = vmul.f32 %v169, %v142
    %v171 = vsub.f32 %v164, %v170
    %v172 = vmul.f32 %v118, %v168
    %v173 = vadd.f32 %v171, %v172
    %v174 = vmax.f32 %v173, 0.0
    %v175 = vrsqrt.pop %v174
    %v176 = vmul.f32 %v175, %v174
    %v177 = vmul.f32 %v176, %v175
    %v178 = vmul.f32 0.5, %v177
    %v179 = vsub.f32 1.5, %v178
    %v180 = vmul.f32 %v175, %v179
    %v181 = vmul.f32 %v174, %v180
    %vm182 = vcmp.eq.f32.partialorder %v174, inf
    %v183 = vsel %vm182, %v174, %v181
    %vm184 = vcmp.eq.f32.partialorder %v174, 0.0
    %v185 = vand.u32 %v174, 2147483648
    %v186 = vsel %vm184, %v185, %v183
    %v187 = vsel %vm105, %v186, 0.0
    %188 = vadd.xlane.f32.xlu0 %v187
    %v189 = vpop.xlane.xlu0 %188
    %v190 = vmul.f32 %v189, 0.0625
    %v191 = vsel %vm84, %v190, 0.0
    %vm192 = vcmask 7168
    %v193 = vsel %vm192, %v191, 0.0
    %194 = vadd.xlane.f32.xlu0 %v193
    %v195 = vpop.xlane.xlu0 %194
    %v196 = vrot.slane %v195, 4
    %v197 = vadd.f32 %v195, %v196
    %v198 = vrot.slane %v197, 2
    %v199 = vadd.f32 %v197, %v198
    %v200 = vrot.slane %v199, 1
    %v201 = vadd.f32 %v199, %v200
    %s202 = vtos %v201
    %v203 = vlaneseq
    %v204 = vand.u32 %v203, 127
    %vm205 = vcmp.eq.s32.totalorder %v81, 0
    %vm206 = vcmp.eq.s32.totalorder %v204, 0
    %vm207 = vmand %vm205, %vm206
    %v208 = vsel %vm207, 1, 0
    %v209 = vcvt.s32.f32 %v208
    %vm210 = vcmp.eq.s32.totalorder %v204, 1
    %vm211 = vmand %vm205, %vm210
    %v212 = vsel %vm211, 1, 0
    %v213 = vcvt.s32.f32 %v212
    %v214 = vstv %s115
    %v215 = vmul.f32 %v214, %v209
    %v216 = vstv %s202
    %v217 = vmul.f32 %v216, %v213
    %v218 = vadd.f32 %v215, %v217
    %219 = vst [vmem:[#allocation10] sm:$0xff] %v218
    // Predicated region
    $region34: #{tpu_custom_call.1} parent=1 // pred_check
      _
    $region35: #{tpu_custom_call.1} parent=1 // pred_check_branch
      %221 = sbr.rel (0) target = $region37
    $region36: #{tpu_custom_call.1} parent=1 // pred_region
      %223 = vsyncadd [#allocation4], 0
      %s225 = sshll.u32 [#allocation10], 4
      %s226 = int_to_ptr.vmem [resolvable:$true] %s225
      %s227 = sshll.u32 %s4, 4
      %s228 = int_to_ptr.hbm [resolvable:$true] %s227
      %230 = dma.vmem_to_hbm [thread:$0]  %s226, 128, %s228, [#allocation4]
    $region37: #{tpu_custom_call.1} parent=1 // pred_fallthru
      _
    // Predicated region
    $region38: #{tpu_custom_call.1} parent=1 // pred_check
      _
    $region39: #{tpu_custom_call.1} parent=1 // pred_check_branch
      %232 = sbr.rel (0) target = $region41
    $region40: #{tpu_custom_call.1} parent=1 // pred_region
      %234 = dma.done [#allocation4], 128
    $region41: #{tpu_custom_call.1} parent=1 // pred_fallthru
      _
    %235 = vsyncpa [#allocation3], 1
    %236 = vsyncpa [#allocation6], 1
    %237 = vsyncpa [#allocation9], 1
    %238 = vsyncpa [#allocation4], 1

</llo_original>
